<compile_context>
chip_gen: v7x
topology: tpu7x:2x2x1
jax: 0.10.0
libtpu: 0.0.40
codegen_flags: <defaults>
</compile_context>

<pallas_src>
import math

import jax
import jax.numpy as jnp
from jax.experimental import pallas as pl
from jax.experimental.pallas import tpu as pltpu


def layernorm_kernel(x_ref, w_ref, b_ref, o_ref, *, eps):
    # Tiny parameter casts, hoisted to the top of the body.
    w32 = w_ref[...].astype(jnp.float32)              # (1, H)
    b32 = b_ref[...].astype(jnp.float32)              # (1, H)

    x = x_ref[...].astype(jnp.float32)                # (row_tile, H), f32 accumulation
    # Single read pass: both moments from the same tile.
    mean = jnp.mean(x, axis=-1, keepdims=True)
    mean_sq = jnp.mean(x * x, axis=-1, keepdims=True)
    # Biased variance (matches .pow(2).mean); clamp guards the E[x^2]-mean^2
    # form against catastrophic cancellation producing a tiny negative value.
    var = jnp.maximum(mean_sq - mean * mean, 0.0)
    inv = jax.lax.rsqrt(var + eps)                    # eps inside sqrt, as in PyTorch
    o_ref[...] = ((x - mean) * inv * w32 + b32).astype(o_ref.dtype)


def _pick_row_tile(rows, H, itemsize):
    """Byte-targeted row tile: ~4 MiB input tiles, VMEM-budget capped, >=2 grid steps."""
    gran = 8 if itemsize >= 4 else 16                 # bf16/fp16 pack 16 rows per vreg
    row_bytes = max(1, H * itemsize)

    # Target ~4 MiB per input tile (small end of the 2-8 MiB range: near the
    # HBM roofline on all generations, cheap on v5e's single vst slot).
    target_tile_bytes = 4 << 20
    tile = target_tile_bytes // row_bytes

    # Hard VMEM budget for pipeline buffers + f32 intermediates per tile:
    # 2x double-buffered (in + out) native-dtype tiles + ~3 f32 temporaries.
    vmem_budget = 24 << 20
    bytes_per_tile_row = 4 * row_bytes + 3 * H * 4
    tile = min(tile, vmem_budget // max(1, bytes_per_tile_row))

    tile = max(gran, (tile // gran) * gran)

    # Never exceed the (granularity-rounded) row count.
    rows_rounded = max(gran, ((rows + gran - 1) // gran) * gran)
    tile = min(tile, rows_rounded)

    # v7x: ensure at least 2 grid steps so the "parallel" row axis can shard
    # across both TensorCores (no effect on single-TC v5e/v6e).
    while tile > gran and -(-rows // tile) < 2:
        tile = max(gran, ((tile // 2) // gran) * gran)
    return tile


def bert_layer_norm(x, weight, bias, eps=1e-12, row_tile=None):
    """x: (..., H). weight, bias: (H,). Returns same shape/dtype as x."""
    orig_shape = x.shape
    H = orig_shape[-1]
    rows = math.prod(orig_shape[:-1]) if len(orig_shape) > 1 else 1

    x2 = x.reshape(rows, H)
    w2 = weight.reshape(1, H)
    b2 = bias.reshape(1, H)

    itemsize = jnp.dtype(x.dtype).itemsize
    gran = 8 if itemsize >= 4 else 16
    if row_tile is None:
        row_tile = _pick_row_tile(rows, H, itemsize)
    else:
        row_tile = max(gran, (int(row_tile) // gran) * gran)

    # No host-side padding: Pallas masks the partial trailing block.  Rows are
    # independent, so garbage in the OOB-read region of the last block is
    # harmless and OOB writes never land.
    grid = (pl.cdiv(rows, row_tile),)

    # VMEM estimate: 2x double-buffered (in + out) tiles + ~3 f32 in-kernel
    # intermediates + params + compiler slack.  Clamp to [32 MiB, 48 MiB]:
    # the floor lifts v5e's 16 MiB default scoped limit, the ceiling leaves
    # headroom under v7x's 64 MiB per-core VMEM.
    tile_in_bytes = row_tile * H * itemsize
    tile_f32_bytes = row_tile * H * 4
    vmem_est = 4 * tile_in_bytes + 3 * tile_f32_bytes + 2 * H * 4 + (8 << 20)
    vmem_limit = int(min(48 << 20, max(32 << 20, vmem_est)))

    # TODO(synk): for H < 128 a lane-dense layout (folding rows into the lane
    # axis with a segmented reduction) would avoid masked partial stores;
    # irrelevant for real BERT hidden sizes (768/1024).
    out = pl.pallas_call(
        lambda xr, wr, br, orf: layernorm_kernel(xr, wr, br, orf, eps=eps),
        out_shape=jax.ShapeDtypeStruct((rows, H), x.dtype),
        grid_spec=pltpu.PrefetchScalarGridSpec(
            num_scalar_prefetch=0,
            grid=grid,
            in_specs=[
                pl.BlockSpec((row_tile, H), lambda i: (i, 0)),
                pl.BlockSpec((1, H), lambda i: (0, 0)),
                pl.BlockSpec((1, H), lambda i: (0, 0)),
            ],
            out_specs=pl.BlockSpec((row_tile, H), lambda i: (i, 0)),
        ),
        compiler_params=pltpu.CompilerParams(
            dimension_semantics=("parallel",),
            vmem_limit_bytes=vmem_limit,
        ),
    )(x2, w2, b2)

    return out.reshape(orig_shape)


def _reference(x, weight, bias, eps):
    xf = x.astype(jnp.float32)
    u = jnp.mean(xf, axis=-1, keepdims=True)
    s = jnp.mean((xf - u) ** 2, axis=-1, keepdims=True)
    y = (xf - u) / jnp.sqrt(s + eps)
    return (weight.astype(jnp.float32) * y + bias.astype(jnp.float32)).astype(x.dtype)


if __name__ == "__main__":
    key = jax.random.PRNGKey(0)
    eps = 1e-12

    # Main small test, consistent with the module (batch=2, seq=8, hidden=32).
    B, S, H = 2, 8, 32
    x = jax.random.normal(key, (B, S, H), dtype=jnp.float32)
    # Deterministic parameter init matching nn.Parameter(torch.ones/zeros(hidden_size)).
    weight = jnp.ones((H,), dtype=jnp.float32)
    bias = jnp.zeros((H,), dtype=jnp.float32)

    out = jax.block_until_ready(bert_layer_norm(x, weight, bias, eps=eps))
    ref = _reference(x, weight, bias, eps)
    assert jnp.allclose(out, ref, atol=1e-5, rtol=1e-5), "mismatch vs reference"

    # Tail-handling path: rows not a multiple of the tile / of 8 (masked
    # partial trailing block, no host-side pad/slice).
    k2 = jax.random.PRNGKey(1)
    x2 = jax.random.normal(k2, (3, 5, H), dtype=jnp.float32)
    out2 = jax.block_until_ready(bert_layer_norm(x2, weight, bias, eps=eps))
    ref2 = _reference(x2, weight, bias, eps)
    assert jnp.allclose(out2, ref2, atol=1e-5, rtol=1e-5), "mismatch vs reference (tail)"

    # Non-trivial affine params + larger row count exercising the byte-sized tile.
    k3, k4, k5 = jax.random.split(jax.random.PRNGKey(2), 3)
    w3 = jax.random.normal(k3, (H,), dtype=jnp.float32)
    b3 = jax.random.normal(k4, (H,), dtype=jnp.float32)
    x3 = 3.0 + 2.0 * jax.random.normal(k5, (4, 40, H), dtype=jnp.float32)
    out3 = jax.block_until_ready(bert_layer_norm(x3, w3, b3, eps=eps))
    ref3 = _reference(x3, w3, b3, eps)
    assert jnp.allclose(out3, ref3, atol=1e-4, rtol=1e-4), "mismatch vs reference (affine)"

    print("KERNEL_OK")
</pallas_src>

<mosaic_0001>
module attributes {stable_mosaic.version = 11 : i64} {
  func.func @_lambda_(%arg0: i32, %arg1: memref<8x32xf32, #tpu.memory_space<vmem>>, %arg2: memref<1x32xf32, #tpu.memory_space<vmem>>, %arg3: memref<1x32xf32, #tpu.memory_space<vmem>>, %arg4: memref<8x32xf32, #tpu.memory_space<vmem>>) attributes {dimension_semantics = [#tpu.dimension_semantics<parallel>], iteration_bounds = array<i64: 2>, scalar_prefetch = 0 : i64, scratch_operands = 0 : i64, tpu.core_type = #tpu.core_type<tc>, window_params = [{transform_indices = @transform_0, window_bounds = array<i64: 8, 32>}, {pipeline_mode = #tpu.pipeline_mode<synchronous>, transform_indices = @transform_1, window_bounds = array<i64: 1, 32>}, {pipeline_mode = #tpu.pipeline_mode<synchronous>, transform_indices = @transform_2, window_bounds = array<i64: 1, 32>}, {transform_indices = @transform_3, window_bounds = array<i64: 8, 32>}]} {
    %c0 = arith.constant 0 : index
    %c0_0 = arith.constant 0 : index
    %0 = vector.load %arg2[%c0, %c0_0] : memref<1x32xf32, #tpu.memory_space<vmem>>, vector<1x32xf32>
    %c0_1 = arith.constant 0 : index
    %c0_2 = arith.constant 0 : index
    %1 = vector.load %arg3[%c0_1, %c0_2] : memref<1x32xf32, #tpu.memory_space<vmem>>, vector<1x32xf32>
    %c0_3 = arith.constant 0 : index
    %c0_4 = arith.constant 0 : index
    %2 = vector.load %arg1[%c0_3, %c0_4] : memref<8x32xf32, #tpu.memory_space<vmem>>, vector<8x32xf32>
    %cst = arith.constant dense<0.000000e+00> : vector<8xf32>
    %3 = vector.multi_reduction <add>, %2, %cst [1] : vector<8x32xf32> to vector<8xf32>
    %4 = vector.shape_cast %3 : vector<8xf32> to vector<8x1xf32>
    %cst_5 = arith.constant 3.200000e+01 : f32
    %5 = vector.broadcast %cst_5 : f32 to vector<8x1xf32>
    %6 = arith.divf %4, %5 : vector<8x1xf32>
    %7 = arith.mulf %2, %2 : vector<8x32xf32>
    %cst_6 = arith.constant dense<0.000000e+00> : vector<8xf32>
    %8 = vector.multi_reduction <add>, %7, %cst_6 [1] : vector<8x32xf32> to vector<8xf32>
    %9 = vector.shape_cast %8 : vector<8xf32> to vector<8x1xf32>
    %cst_7 = arith.constant 3.200000e+01 : f32
    %10 = vector.broadcast %cst_7 : f32 to vector<8x1xf32>
    %11 = arith.divf %9, %10 : vector<8x1xf32>
    %12 = arith.mulf %6, %6 : vector<8x1xf32>
    %13 = arith.subf %11, %12 : vector<8x1xf32>
    %cst_8 = arith.constant 0.000000e+00 : f32
    %14 = vector.broadcast %cst_8 : f32 to vector<8x1xf32>
    %15 = arith.maximumf %13, %14 : vector<8x1xf32>
    %cst_9 = arith.constant 9.99999996E-13 : f32
    %16 = vector.broadcast %cst_9 : f32 to vector<8x1xf32>
    %17 = arith.addf %15, %16 : vector<8x1xf32>
    %18 = math.rsqrt %17 : vector<8x1xf32>
    %19 = vector.broadcast %6 : vector<8x1xf32> to vector<8x32xf32>
    %20 = arith.subf %2, %19 : vector<8x32xf32>
    %21 = vector.broadcast %18 : vector<8x1xf32> to vector<8x32xf32>
    %22 = arith.mulf %20, %21 : vector<8x32xf32>
    %23 = vector.broadcast %0 : vector<1x32xf32> to vector<8x32xf32>
    %24 = arith.mulf %22, %23 : vector<8x32xf32>
    %25 = vector.broadcast %1 : vector<1x32xf32> to vector<8x32xf32>
    %26 = arith.addf %24, %25 : vector<8x32xf32>
    %c0_10 = arith.constant 0 : index
    %c0_11 = arith.constant 0 : index
    %27 = vector.load %arg4[%c0_10, %c0_11] : memref<8x32xf32, #tpu.memory_space<vmem>>, vector<8x32xf32>
    tpu.vector_store %arg4[%c0_10, %c0_11], %26 {strides = array<i32>} : memref<8x32xf32, #tpu.memory_space<vmem>>, vector<8x32xf32>,
    return
  }
  func.func @transform_0(%arg0: i32) -> (i32, i32) {
    %c0_i32 = arith.constant 0 : i32
    %c0_i32_0 = arith.constant 0 : i32
    return %arg0, %c0_i32 : i32, i32
  }
  func.func @transform_1(%arg0: i32) -> (i32, i32) {
    %c0_i32 = arith.constant 0 : i32
    %c0_i32_0 = arith.constant 0 : i32
    %c0_i32_1 = arith.constant 0 : i32
    return %c0_i32, %c0_i32_0 : i32, i32
  }
  func.func @transform_2(%arg0: i32) -> (i32, i32) {
    %c0_i32 = arith.constant 0 : i32
    %c0_i32_0 = arith.constant 0 : i32
    %c0_i32_1 = arith.constant 0 : i32
    return %c0_i32, %c0_i32_0 : i32, i32
  }
  func.func @transform_3(%arg0: i32) -> (i32, i32) {
    %c0_i32 = arith.constant 0 : i32
    %c0_i32_0 = arith.constant 0 : i32
    return %arg0, %c0_i32 : i32, i32
  }
}

</mosaic_0001>

<llo_original>
// kernel: tpu_custom_call.1
$region0: #{tpu_custom_call.1}
  #allocation0 [shape = 'u32[]', space=smem, size = 0x4, offset = 0x4, fixed_abs, tag = 'smem constant byte address 0x4 - core index']
  #allocation1 [shape = 'u32[144,128]{1,0:T(1,128)}', space=vmem, size = 0x12000, scoped, tag = 'internal scratch']
  %s0 = inlined_call_operand.hbm [shape: f32[16,32], index: 0, kind: input, shape index: {}]
  %s1 = inlined_call_operand.vmem [shape: f32[1,32], index: 1, kind: input, shape index: {}]
  %s2 = inlined_call_operand.vmem [shape: f32[1,32], index: 2, kind: input, shape index: {}]
  %s3 = inlined_call_operand.hbm [shape: f32[16,32], index: 3, kind: output, shape index: {}]
  %s4 = sld [smem:[#allocation0]]
  $region49: #{tpu_custom_call.1} parent=0
    _
  %s6 = ssub.s32 1, %s4
  %s7 = scalar_select 0, %s6, %s4
  $region1: #{tpu_custom_call.1} parent=0
    #allocation2 [shape = 'u8[8192]{0}', space=vmem, size = 0x2000, scoped, tag = 'input window, operand 0']
    #allocation3 [shape = 's32[2]{0}', space=sflag, size = 0x8, scoped, tag = 'scoped memory for tpu_custom_call.1']
    #allocation4 [shape = 's32[2]{0}', space=sflag, size = 0x8, scoped, tag = 'scoped memory for tpu_custom_call.1']
    #allocation5 [shape = 'u8[8192]{0}', space=vmem, size = 0x2000, scoped, tag = 'output window, operand 0']
    %8 = vsyncpa [#allocation3], 0
    %s9 = scalar_lea.sflag [#allocation3], 1
    %10 = vsyncpa %s9, 0
    %11 = vsyncpa [#allocation4], 0
    %s12 = scalar_lea.sflag [#allocation4], 1
    %13 = vsyncpa %s12, 0
    loop: start=0, step=1, limit=4
    $region2: #{tpu_custom_call.1} parent=1 // loop_pre_header
      _
    $region3: #{tpu_custom_call.1} parent=1 // loop_header
      %s15 = sphi 0, %s19
      %p16 = scmp.ge.s32.totalorder %s15, 4
      %s25 = sphi 0, %s27
      %s28 = sphi 0, %s25
      %s29 = sphi 0, %s28
      %s45 = sphi 0, %s29
      %s49 = sphi 0, %s49
      %s51 = sphi 0, %s49
      %s52 = sphi 0, %s51
      %s66 = sphi 0, %s52
      %s70 = sphi 0, %s70
      %s72 = sphi 0, %s70
      %s73 = sphi 0, %s72
      %s87 = sphi 0, %s73
      %s93 = sphi 0, %s95
      %s96 = sphi 0, %s93
      %s97 = sphi 0, %s96
      %s113 = sphi 0, %s97
    $region4: #{tpu_custom_call.1} parent=1 // loop_header_branch
      %18 = sbr.rel (%p16) target = $region8
    $region5: #{tpu_custom_call.1} parent=1 // loop_body
      %s20 = ssub.s32 %s15, 1
      %s21 = ssub.s32 %s15, 2
      %s22 = sadd.s32 %s15, 1
      %s23 = ssub.s32 %s15, %s22
      %p24 = scmp.eq.s32.totalorder %s23, 0
      %s26 = sadd.s32 %s25, 1
      %s27 = scalar_select %p24, %s25, %s26
      %p30 = pneg %p24
      %p31 = scmp.eq.s32.totalorder %s15, 1
      %p32 = por %p30, %p31
      %p33 = scmp.ne.s32.totalorder %s25, %s28
      %p34 = scmp.eq.s32.totalorder %s15, 0
      %p35 = por %p33, %p34
      %p36 = scmp.ne.s32.totalorder %s25, %s28
      %p37 = scmp.eq.s32.totalorder %s20, 1
      %p38 = por %p36, %p37
      %p39 = scmp.ne.s32.totalorder %s28, %s29
      %p40 = scmp.eq.s32.totalorder %s20, 0
      %p41 = por %p39, %p40
      %p42 = scmp.ne.s32.totalorder %s28, %s29
      %p43 = scmp.eq.s32.totalorder %s21, 1
      %p44 = por %p42, %p43
      %p46 = scmp.ne.s32.totalorder %s29, %s45
      %p47 = scmp.eq.s32.totalorder %s21, 0
      %p48 = por %p46, %p47
      %s50 = sadd.s32 %s49, 1
      %p53 = scmp.eq.s32.totalorder %s15, 1
      %p54 = scmp.ne.s32.totalorder %s49, %s51
      %p55 = scmp.eq.s32.totalorder %s15, 0
      %p56 = por %p54, %p55
      %p57 = scmp.ne.s32.totalorder %s49, %s51
      %p58 = scmp.eq.s32.totalorder %s20, 1
      %p59 = por %p57, %p58
      %p60 = scmp.ne.s32.totalorder %s51, %s52
      %p61 = scmp.eq.s32.totalorder %s20, 0
      %p62 = por %p60, %p61
      %p63 = scmp.ne.s32.totalorder %s51, %s52
      %p64 = scmp.eq.s32.totalorder %s21, 1
      %p65 = por %p63, %p64
      %p67 = scmp.ne.s32.totalorder %s52, %s66
      %p68 = scmp.eq.s32.totalorder %s21, 0
      %p69 = por %p67, %p68
      %s71 = sadd.s32 %s70, 1
      %p74 = scmp.eq.s32.totalorder %s15, 1
      %p75 = scmp.ne.s32.totalorder %s70, %s72
      %p76 = scmp.eq.s32.totalorder %s15, 0
      %p77 = por %p75, %p76
      %p78 = scmp.ne.s32.totalorder %s70, %s72
      %p79 = scmp.eq.s32.totalorder %s20, 1
      %p80 = por %p78, %p79
      %p81 = scmp.ne.s32.totalorder %s72, %s73
      %p82 = scmp.eq.s32.totalorder %s20, 0
      %p83 = por %p81, %p82
      %p84 = scmp.ne.s32.totalorder %s72, %s73
      %p85 = scmp.eq.s32.totalorder %s21, 1
      %p86 = por %p84, %p85
      %p88 = scmp.ne.s32.totalorder %s73, %s87
      %p89 = scmp.eq.s32.totalorder %s21, 0
      %p90 = por %p88, %p89
      %s91 = ssub.s32 %s15, %s22
      %p92 = scmp.eq.s32.totalorder %s91, 0
      %s94 = sadd.s32 %s93, 1
      %s95 = scalar_select %p92, %s93, %s94
      %p98 = pneg %p92
      %p99 = scmp.eq.s32.totalorder %s15, 1
      %p100 = por %p98, %p99
      %p101 = scmp.ne.s32.totalorder %s93, %s96
      %p102 = scmp.eq.s32.totalorder %s15, 0
      %p103 = por %p101, %p102
      %p104 = scmp.ne.s32.totalorder %s93, %s96
      %p105 = scmp.eq.s32.totalorder %s20, 1
      %p106 = por %p104, %p105
      %p107 = scmp.ne.s32.totalorder %s96, %s97
      %p108 = scmp.eq.s32.totalorder %s20, 0
      %p109 = por %p107, %p108
      %p110 = scmp.ne.s32.totalorder %s96, %s97
      %p111 = scmp.eq.s32.totalorder %s21, 1
      %p112 = por %p110, %p111
      %p114 = scmp.ne.s32.totalorder %s97, %s113
      %p115 = scmp.eq.s32.totalorder %s21, 0
      %p116 = por %p114, %p115
      %p117 = scmp.le.s32.totalorder 1, %s15
      %p118 = scmp.lt.s32.totalorder %s15, 3
      %p119 = pnand %p117, %p118
      %p120 = pneg %p119
      // Predicated region
      $region9: #{tpu_custom_call.1} parent=5 // pred_check
        _
      $region10: #{tpu_custom_call.1} parent=5 // pred_check_branch
        %122 = sbr.rel (%p119) target = $region12
      $region11: #{tpu_custom_call.1} parent=5 // pred_region
        %s123 = ssub.s32 %s15, 1
        // Predicated region
        $region13: #{tpu_custom_call.1} parent=11 // pred_check
          %p124 = pneg %p62
        $region14: #{tpu_custom_call.1} parent=11 // pred_check_branch
          %126 = sbr.rel (%p124) target = $region16
        $region15: #{tpu_custom_call.1} parent=11 // pred_region
          _
        $region16: #{tpu_custom_call.1} parent=11 // pred_fallthru
          _
        // Predicated region
        $region17: #{tpu_custom_call.1} parent=11 // pred_check
          %p127 = pneg %p83
        $region18: #{tpu_custom_call.1} parent=11 // pred_check_branch
          %129 = sbr.rel (%p127) target = $region20
        $region19: #{tpu_custom_call.1} parent=11 // pred_region
          _
        $region20: #{tpu_custom_call.1} parent=11 // pred_fallthru
          _
      $region12: #{tpu_custom_call.1} parent=5 // pred_fallthru
        _
      %p130 = scmp.lt.s32.totalorder %s15, 2
      // Predicated region
      $region21: #{tpu_custom_call.1} parent=5 // pred_check
        %p131 = pneg %p130
      $region22: #{tpu_custom_call.1} parent=5 // pred_check_branch
        %133 = sbr.rel (%p131) target = $region24
      $region23: #{tpu_custom_call.1} parent=5 // pred_region
        // Predicated region
        $region25: #{tpu_custom_call.1} parent=23 // pred_check
          %p134 = pneg %p35
        $region26: #{tpu_custom_call.1} parent=23 // pred_check_branch
          %136 = sbr.rel (%p134) target = $region28
        $region27: #{tpu_custom_call.1} parent=23 // pred_region
          %s137 = sand.u32 %s25, 1
          %s138 = scalar_lea.sflag [#allocation3], %s137
          %s139 = sand.u32 %s25, 1
          %s140 = smul.addr %s139, 8
          %s141 = scalar_lea.vmem [#allocation2], %s140
          %s143 = ssub.s32 128, 128
          %144 = vsyncadd %s138, %s143
          %s145 = smul.addr %s15, 128
          %s146 = scalar_lea.hbm %s0, %s145
          %s148 = sshll.u32 %s141, 4
          %s149 = int_to_ptr.vmem [resolvable:$true] %s148
          %151 = dma.hbm_to_vmem [thread:$0]  %s146, 128, %s149, %s138
        $region28: #{tpu_custom_call.1} parent=23 // pred_fallthru
          _
      $region24: #{tpu_custom_call.1} parent=5 // pred_fallthru
        _
      %p152 = scmp.le.s32.totalorder 1, %s15
      %p153 = scmp.lt.s32.totalorder %s15, 3
      %p154 = pnand %p152, %p153
      %p155 = pneg %p154
      // Predicated region
      $region29: #{tpu_custom_call.1} parent=5 // pred_check
        _
      $region30: #{tpu_custom_call.1} parent=5 // pred_check_branch
        %157 = sbr.rel (%p154) target = $region32
      $region31: #{tpu_custom_call.1} parent=5 // pred_region
        %s158 = ssub.s32 %s15, 1
        %s159 = sand.u32 %s28, 1
        %s160 = scalar_lea.sflag [#allocation3], %s159
        %s161 = sand.u32 %s28, 1
        %s162 = smul.addr %s161, 8
        %s163 = scalar_lea.vmem [#allocation2], %s162
        // Predicated region
        $region33: #{tpu_custom_call.1} parent=31 // pred_check
          %p164 = pneg %p41
        $region34: #{tpu_custom_call.1} parent=31 // pred_check_branch
          %166 = sbr.rel (%p164) target = $region36
        $region35: #{tpu_custom_call.1} parent=31 // pred_region
          %167 = dma.done %s160, 128
        $region36: #{tpu_custom_call.1} parent=31 // pred_fallthru
          _
        %s168 = sand.u32 %s28, 1
        %s169 = scalar_lea.sflag [#allocation3], %s168
        %s170 = sand.u32 %s28, 1
        %s171 = smul.addr %s170, 8
        %s172 = scalar_lea.vmem [#allocation2], %s171
        %p173 = pneg %p41
        %p174 = pneg %p38
        %p175 = pneg %p62
        %p176 = pneg %p59
        %p177 = pneg %p83
        %p178 = pneg %p80
        %p179 = pneg %p109
        %p180 = pneg %p106
        %s181 = sand.u32 %s96, 1
        %s182 = scalar_lea.sflag [#allocation4], %s181
        %s183 = sand.u32 %s96, 1
        %s184 = smul.addr %s183, 8
        %s185 = scalar_lea.vmem [#allocation5], %s184
        %v186 = vld [vmem:[%s1] sm:$0x1]
        %v187 = vld [vmem:[%s2] sm:$0x1]
        %v188 = vld [vmem:[%s163] sm:$0xff]
        %vm189 = vcmask 261120
        %v190 = vsel %vm189, %v188, 0.0
        %191 = vadd.xlane.f32.xlu0 %v190
        %v192 = vpop.xlane.xlu0 %191
        %v193 = vrcp.pop 32.0
        %v194 = vmul.f32 %v192, %v193
        %v195 = vmul.f32 %v188, %v188
        %v196 = vsel %vm189, %v195, 0.0
        %197 = vadd.xlane.f32.xlu0 %v196
        %v198 = vpop.xlane.xlu0 %197
        %v199 = vmul.f32 %v198, %v193
        %v200 = vmul.f32 %v194, %v194
        %v201 = vsub.f32 %v199, %v200
        %v202 = vmax.f32 %v201, 0.0
        %v203 = vadd.f32 %v202, 1e-12
        %v204 = vrsqrt.pop %v203
        %v205 = vsub.f32 %v188, %v194
        %v206 = vmul.f32 %v205, %v204
        %v208 = vlaneseq
        %v209 = vshrl.u32 %v208, 7
        %v210 = vsub.s32 0, %v209
        %v211 = vrot.slane %v186, %v210
        %v213 = vmul.f32 %v206, %v211
        %v215 = vlaneseq
        %v216 = vshrl.u32 %v215, 7
        %v217 = vsub.s32 0, %v216
        %v218 = vrot.slane %v187, %v217
        %v220 = vadd.f32 %v213, %v218
        %221 = vst.msk [vmem:[%s185] sm:$0xff] %vm189, %v220
        %s222 = sand.u32 %s96, 1
        %s223 = scalar_lea.sflag [#allocation4], %s222
        %s224 = sand.u32 %s96, 1
        %s225 = smul.addr %s224, 8
        %s226 = scalar_lea.vmem [#allocation5], %s225
        // Predicated region
        $region37: #{tpu_custom_call.1} parent=31 // pred_check
          %p227 = pneg %p106
        $region38: #{tpu_custom_call.1} parent=31 // pred_check_branch
          %229 = sbr.rel (%p227) target = $region40
        $region39: #{tpu_custom_call.1} parent=31 // pred_region
          %s231 = ssub.s32 128, 128
          %232 = vsyncadd %s223, %s231
          %s233 = smul.addr %s20, 128
          %s234 = scalar_lea.hbm %s3, %s233
          %s236 = sshll.u32 %s226, 4
          %s237 = int_to_ptr.vmem [resolvable:$true] %s236
          %239 = dma.vmem_to_hbm [thread:$0]  %s237, 128, %s234, %s223
        $region40: #{tpu_custom_call.1} parent=31 // pred_fallthru
          _
      $region32: #{tpu_custom_call.1} parent=5 // pred_fallthru
        _
      %p240 = scmp.le.s32.totalorder 2, %s15
      // Predicated region
      $region41: #{tpu_custom_call.1} parent=5 // pred_check
        %p241 = pneg %p240
      $region42: #{tpu_custom_call.1} parent=5 // pred_check_branch
        %243 = sbr.rel (%p241) target = $region44
      $region43: #{tpu_custom_call.1} parent=5 // pred_region
        %s244 = ssub.s32 %s15, 2
        // Predicated region
        $region45: #{tpu_custom_call.1} parent=43 // pred_check
          %p245 = pneg %p112
        $region46: #{tpu_custom_call.1} parent=43 // pred_check_branch
          %247 = sbr.rel (%p245) target = $region48
        $region47: #{tpu_custom_call.1} parent=43 // pred_region
          %s248 = sand.u32 %s97, 1
          %s249 = scalar_lea.sflag [#allocation4], %s248
          %s250 = sand.u32 %s97, 1
          %s251 = smul.addr %s250, 8
          %s252 = scalar_lea.vmem [#allocation5], %s251
          %253 = dma.done %s249, 128
        $region48: #{tpu_custom_call.1} parent=43 // pred_fallthru
          _
      $region44: #{tpu_custom_call.1} parent=5 // pred_fallthru
        _
    $region6: #{tpu_custom_call.1} parent=1 // loop_footer
      %s19 = sadd.s32 1, %s15
    $region7: #{tpu_custom_call.1} parent=1 // loop_footer_branch
      %14 = sbr.rel target = $region3
    $region8: #{tpu_custom_call.1} parent=1 // loop_exit
      _
    %254 = vsyncpa [#allocation3], 1
    %s255 = scalar_lea.sflag [#allocation3], 1
    %256 = vsyncpa %s255, 1
    %257 = vsyncpa [#allocation4], 1
    %s258 = scalar_lea.sflag [#allocation4], 1
    %259 = vsyncpa %s258, 1

</llo_original>
